<compile_context>
chip_gen: v7x
topology: tpu7x:2x2x1
jax: 0.10.0
libtpu: 0.0.40
codegen_flags: <defaults>
</compile_context>

<pallas_src>
import functools

import jax
import jax.numpy as jnp
from jax import lax
from jax.experimental import pallas as pl
from jax.experimental.pallas import tpu as pltpu


_VMEM_LIMIT_BYTES = 48 * 1024 * 1024   # comfortably under v7x's 64 MiB physical VMEM


def _round_up(x, m):
    return ((x + m - 1) // m) * m


# -----------------------------------------------------------------------------
# Path A: large vocab -- embedding table stays in HBM, rows gathered with
# per-row DMAs, double-buffered across token tiles.
# -----------------------------------------------------------------------------
def _w2v_hbm_kernel(idx_ref, emb_hbm_ref, w_ref, b_ref, out_ref,
                    rows_ref, sem, *, tm):
    # idx_ref     : SMEM (n_pad,) int32       scalar-prefetched token ids
    # emb_hbm_ref : HBM  (D, H) bf16          full embedding table (pl.ANY)
    # w_ref       : VMEM (H, TN) bf16         output-weight tile (pre-transposed)
    # b_ref       : VMEM (1, TN) f32          output-bias tile
    # out_ref     : VMEM (TM, TN) out dtype   lane-dense output block
    # rows_ref    : VMEM (2, TM, H) bf16      double-buffered gathered rows
    # sem         : DMA semaphores (2,)       one per rows slot
    i = pl.program_id(0)            # token tile
    j = pl.program_id(1)            # vocab (output-feature) tile
    slot = lax.rem(i, 2)

    def start_gather(tile, dst_slot):
        base = tile * tm

        def _start(r, c):
            tok = idx_ref[base + r]
            pltpu.make_async_copy(emb_hbm_ref.at[tok],
                                  rows_ref.at[dst_slot, r],
                                  sem.at[dst_slot]).start()
            return c

        lax.fori_loop(0, tm, _start, 0)

    @pl.when(j == 0)
    def _gather():
        # Pipeline fill: the very first token tile has nobody to prefetch it.
        @pl.when(i == 0)
        def _prime():
            start_gather(i, slot)

        # Wait for this tile's rows (normally started one full token tile ago,
        # so already complete).  Waits use the real copy descriptors.
        def _wait(r, c):
            tok = idx_ref[i * tm + r]
            pltpu.make_async_copy(emb_hbm_ref.at[tok],
                                  rows_ref.at[slot, r],
                                  sem.at[slot]).wait()
            return c

        lax.fori_loop(0, tm, _wait, 0)

        # Prefetch the next token tile's rows into the other slot; those DMAs
        # complete while this tile's d_tiles matmul steps run.
        @pl.when(i + 1 < pl.num_programs(0))
        def _prefetch():
            start_gather(i + 1, 1 - slot)

    acc = jnp.dot(rows_ref[slot], w_ref[...],
                  preferred_element_type=jnp.float32)           # (TM, TN) on MXU
    out_ref[...] = (acc + b_ref[...]).astype(out_ref.dtype)


# -----------------------------------------------------------------------------
# Path B: small vocab -- embedding table is VMEM-resident (constant index_map);
# rows gathered with plain VMEM reads (no per-row DMA descriptor overhead).
# The f32 staging scratch avoids dynamic sublane slicing of packed bf16; the
# bf16 cast happens once per token tile (not per vocab tile).
# -----------------------------------------------------------------------------
def _w2v_vmem_kernel(idx_ref, emb_ref, w_ref, b_ref, out_ref,
                     rows_f32_ref, rows_bf_ref, *, tm):
    i = pl.program_id(0)
    j = pl.program_id(1)

    @pl.when(j == 0)
    def _gather():
        base = i * tm

        def _copy(r, c):
            tok = idx_ref[base + r]
            rows_f32_ref[pl.ds(r, 1), :] = emb_ref[pl.ds(tok, 1), :]
            return c

        lax.fori_loop(0, tm, _copy, 0)
        rows_bf_ref[...] = rows_f32_ref[...].astype(jnp.bfloat16)

    acc = jnp.dot(rows_bf_ref[...], w_ref[...],
                  preferred_element_type=jnp.float32)
    out_ref[...] = (acc + b_ref[...]).astype(out_ref.dtype)


def word2vec_forward(x_idx, embed_weight, out_weight, out_bias, *,
                     tm=256, tn=512, out_dtype=jnp.bfloat16,
                     table_vmem_bytes=4 << 20):
    """forward(x) = embed(x) @ W_out.T + b_out.

    x_idx: int (B, S); embed_weight: (D, H); out_weight: (D, H); out_bias: (D,).
    Returns (B, S, D) in `out_dtype` (bf16 by default; pass jnp.float32 to
    match the PyTorch module's dtype exactly at the cost of 2x writeback).
    """
    B, S = x_idx.shape
    D, H = embed_weight.shape
    N = B * S

    # TM token rows per tile (multiple of 8 sublanes), TN output-vocab columns
    # per tile (multiple of 128 lanes).
    tm = max(8, min(_round_up(tm, 8), _round_up(N, 8)))
    tn = max(128, min(_round_up(tn, 128), _round_up(D, 128)))
    n_pad = _round_up(N, tm)
    d_pad = _round_up(D, tn)
    n_tiles = n_pad // tm
    d_tiles = d_pad // tn

    idx_flat = x_idx.reshape(N).astype(jnp.int32)
    if n_pad != N:
        idx_flat = jnp.pad(idx_flat, (0, n_pad - N))       # pad with token 0 (valid row)

    w_t = out_weight.T.astype(jnp.bfloat16)                 # (H, D) bf16: half the weight DMA
    b = out_bias.astype(jnp.float32)
    if d_pad != D:
        w_t = jnp.pad(w_t, ((0, 0), (0, d_pad - D)))
        b = jnp.pad(b, (0, d_pad - D))
    b2 = b.reshape(1, d_pad)

    use_vmem_table = (D * H * 4) <= table_vmem_bytes

    w_spec = pl.BlockSpec((H, tn), lambda i, j, idx: (0, j))
    b_spec = pl.BlockSpec((1, tn), lambda i, j, idx: (0, j))
    out_spec = pl.BlockSpec((tm, tn), lambda i, j, idx: (i, j))

    if use_vmem_table:
        kernel = functools.partial(_w2v_vmem_kernel, tm=tm)
        emb = embed_weight.astype(jnp.float32)
        emb_spec = pl.BlockSpec((D, H), lambda i, j, idx: (0, 0))   # VMEM-resident
        scratch = [pltpu.VMEM((tm, H), jnp.float32),
                   pltpu.VMEM((tm, H), jnp.bfloat16)]
        # No state carried across token tiles -> token axis can shard across
        # the two TensorCores on v7x.
        dims = ("parallel", "arbitrary")
    else:
        kernel = functools.partial(_w2v_hbm_kernel, tm=tm)
        emb = embed_weight.astype(jnp.bfloat16)              # bf16 halves gather bytes
        emb_spec = pl.BlockSpec(memory_space=pl.ANY)         # table stays in HBM
        scratch = [pltpu.VMEM((2, tm, H), jnp.bfloat16),     # row double-buffer
                   pltpu.SemaphoreType.DMA((2,))]            # per-slot semaphores
        # Gather prefetch carries state (rows slot + semaphores) across token
        # tiles, so that axis must run sequentially ("arbitrary").
        dims = ("arbitrary", "arbitrary")

    grid_spec = pltpu.PrefetchScalarGridSpec(
        num_scalar_prefetch=1,                               # token ids land in SMEM
        grid=(n_tiles, d_tiles),
        in_specs=[emb_spec, w_spec, b_spec],
        out_specs=out_spec,
        scratch_shapes=scratch,
    )

    out = pl.pallas_call(
        kernel,
        out_shape=jax.ShapeDtypeStruct((n_pad, d_pad), out_dtype),
        grid_spec=grid_spec,
        compiler_params=pltpu.CompilerParams(
            dimension_semantics=dims,
            vmem_limit_bytes=_VMEM_LIMIT_BYTES),
    )(idx_flat, emb, w_t, b2)

    return out[:N, :D].reshape(B, S, D)


if __name__ == "__main__":
    key = jax.random.PRNGKey(0)

    def make_case(k, D, H, B, S):
        k_idx, k_emb, k_w, k_b = jax.random.split(k, 4)
        x_idx = jax.random.randint(k_idx, (B, S), 0, D, dtype=jnp.int32)
        embed_weight = jax.random.normal(k_emb, (D, H), dtype=jnp.float32)   # nn.Embedding ~ N(0,1)
        bound = 1.0 / float(H) ** 0.5
        out_weight = jax.random.uniform(k_w, (D, H), jnp.float32, -bound, bound)  # nn.Linear init
        out_bias = jax.random.uniform(k_b, (D,), jnp.float32, -bound, bound)
        return x_idx, embed_weight, out_weight, out_bias

    def check(y, x_idx, embed_weight, out_weight, out_bias):
        ref = embed_weight[x_idx] @ out_weight.T + out_bias
        assert y.shape == ref.shape, (y.shape, ref.shape)
        # bf16 matmul inputs / bf16 output => intentionally loosened tolerance.
        err = float(jnp.max(jnp.abs(y.astype(jnp.float32) - ref)))
        assert err < 3e-2, err

    k1, k2 = jax.random.split(key)

    # Case 1: module-like small shapes; small table -> VMEM-resident path.
    args1 = make_case(k1, 256, 128, 2, 8)
    y1 = jax.block_until_ready(word2vec_forward(*args1))
    check(y1, *args1)

    # Case 2: force the HBM-gather path with a multi-tile grid so the
    # double-buffered cross-token-tile row prefetch is exercised.
    args2 = make_case(k2, 512, 128, 4, 32)
    y2 = jax.block_until_ready(
        word2vec_forward(*args2, tm=32, tn=128, table_vmem_bytes=0))
    check(y2, *args2)

    print("KERNEL_OK")
</pallas_src>

<mosaic_0001>
module attributes {stable_mosaic.version = 11 : i64} {
  func.func @_w2v_vmem_kernel(%arg0: i32, %arg1: i32, %arg2: memref<16xi32, #tpu.memory_space<smem>>, %arg3: memref<256x128xf32, #tpu.memory_space<vmem>>, %arg4: memref<128x256xbf16, #tpu.memory_space<vmem>>, %arg5: memref<1x256xf32, #tpu.memory_space<vmem>>, %arg6: memref<16x256xbf16, #tpu.memory_space<vmem>>, %arg7: memref<16x128xf32, #tpu.memory_space<vmem>>, %arg8: memref<16x128xbf16, #tpu.memory_space<vmem>>) attributes {dimension_semantics = [#tpu.dimension_semantics<parallel>, #tpu.dimension_semantics<arbitrary>], iteration_bounds = array<i64: 1, 1>, scalar_prefetch = 1 : i64, scratch_operands = 2 : i64, tpu.core_type = #tpu.core_type<tc>, window_params = [{pipeline_mode = #tpu.pipeline_mode<synchronous>, transform_indices = @transform_0, window_bounds = array<i64: 256, 128>}, {transform_indices = @transform_1, window_bounds = array<i64: 128, 256>}, {transform_indices = @transform_2, window_bounds = array<i64: 1, 256>}, {transform_indices = @transform_3, window_bounds = array<i64: 16, 256>}]} {
    %c0_i32 = arith.constant 0 : i32
    %0 = arith.cmpi eq, %arg1, %c0_i32 : i32
    %1 = arith.extui %0 : i1 to i32
    %c0_i32_0 = arith.constant 0 : i32
    %2 = arith.cmpi ne, %1, %c0_i32_0 : i32
    scf.if %2 {
      %c16_i32 = arith.constant 16 : i32
      %11 = arith.muli %arg0, %c16_i32 : i32
      %c0_i32_8 = arith.constant 0 : i32
      %c16_i32_9 = arith.constant 16 : i32
      %12 = arith.addi %c0_i32_8, %c16_i32_9 : i32
      %c1_i32 = arith.constant 1 : i32
      scf.for %arg9 = %c0_i32_8 to %12 step %c1_i32  : i32 {
        %16 = arith.addi %11, %arg9 : i32
        %17 = arith.index_cast %16 : i32 to index
        %18 = memref.load %arg2[%17] : memref<16xi32, #tpu.memory_space<smem>>
        %19 = arith.index_cast %18 : i32 to index
        %c0_15 = arith.constant 0 : index
        %20 = vector.load %arg3[%19, %c0_15] : memref<256x128xf32, #tpu.memory_space<vmem>>, vector<1x128xf32>
        %21 = arith.index_cast %arg9 : i32 to index
        %c0_16 = arith.constant 0 : index
        %22 = vector.load %arg7[%21, %c0_16] : memref<16x128xf32, #tpu.memory_space<vmem>>, vector<1x128xf32>
        tpu.vector_store %arg7[%21, %c0_16], %20 {strides = array<i32>} : memref<16x128xf32, #tpu.memory_space<vmem>>, vector<1x128xf32>,
      }
      %c16_i32_10 = arith.constant 16 : i32
      %c0_11 = arith.constant 0 : index
      %c0_12 = arith.constant 0 : index
      %13 = vector.load %arg7[%c0_11, %c0_12] : memref<16x128xf32, #tpu.memory_space<vmem>>, vector<16x128xf32>
      %14 = arith.truncf %13 : vector<16x128xf32> to vector<16x128xbf16>
      %c0_13 = arith.constant 0 : index
      %c0_14 = arith.constant 0 : index
      %15 = vector.load %arg8[%c0_13, %c0_14] : memref<16x128xbf16, #tpu.memory_space<vmem>>, vector<16x128xbf16>
      tpu.vector_store %arg8[%c0_13, %c0_14], %14 {strides = array<i32>} : memref<16x128xbf16, #tpu.memory_space<vmem>>, vector<16x128xbf16>,
    } else {
    }
    %c0 = arith.constant 0 : index
    %c0_1 = arith.constant 0 : index
    %3 = vector.load %arg8[%c0, %c0_1] : memref<16x128xbf16, #tpu.memory_space<vmem>>, vector<16x128xbf16>
    %c0_2 = arith.constant 0 : index
    %c0_3 = arith.constant 0 : index
    %4 = vector.load %arg4[%c0_2, %c0_3] : memref<128x256xbf16, #tpu.memory_space<vmem>>, vector<128x256xbf16>
    %cst = arith.constant dense<0.000000e+00> : vector<16x256xf32>
    %5 = tpu.matmul %3, %4, %cst {dimension_numbers = #tpu.dot_dimension_numbers<[1], [0], [0], [1], [0, 0, 1, 1], [], []>} : vector<16x128xbf16>, vector<128x256xbf16>, vector<16x256xf32> -> vector<16x256xf32>
    %c0_4 = arith.constant 0 : index
    %c0_5 = arith.constant 0 : index
    %6 = vector.load %arg5[%c0_4, %c0_5] : memref<1x256xf32, #tpu.memory_space<vmem>>, vector<1x256xf32>
    %7 = vector.broadcast %6 : vector<1x256xf32> to vector<16x256xf32>
    %8 = arith.addf %5, %7 : vector<16x256xf32>
    %9 = arith.truncf %8 : vector<16x256xf32> to vector<16x256xbf16>
    %c0_6 = arith.constant 0 : index
    %c0_7 = arith.constant 0 : index
    %10 = vector.load %arg6[%c0_6, %c0_7] : memref<16x256xbf16, #tpu.memory_space<vmem>>, vector<16x256xbf16>
    tpu.vector_store %arg6[%c0_6, %c0_7], %9 {strides = array<i32>} : memref<16x256xbf16, #tpu.memory_space<vmem>>, vector<16x256xbf16>,
    return
  }
  func.func @transform_0(%arg0: i32, %arg1: i32, %arg2: memref<16xi32, #tpu.memory_space<smem>>) -> (i32, i32) {
    %c0_i32 = arith.constant 0 : i32
    %c0_i32_0 = arith.constant 0 : i32
    %c0_i32_1 = arith.constant 0 : i32
    return %c0_i32, %c0_i32_0 : i32, i32
  }
  func.func @transform_1(%arg0: i32, %arg1: i32, %arg2: memref<16xi32, #tpu.memory_space<smem>>) -> (i32, i32) {
    %c0_i32 = arith.constant 0 : i32
    %c0_i32_0 = arith.constant 0 : i32
    return %c0_i32, %arg1 : i32, i32
  }
  func.func @transform_2(%arg0: i32, %arg1: i32, %arg2: memref<16xi32, #tpu.memory_space<smem>>) -> (i32, i32) {
    %c0_i32 = arith.constant 0 : i32
    %c0_i32_0 = arith.constant 0 : i32
    return %c0_i32, %arg1 : i32, i32
  }
  func.func @transform_3(%arg0: i32, %arg1: i32, %arg2: memref<16xi32, #tpu.memory_space<smem>>) -> (i32, i32) {
    %c0_i32 = arith.constant 0 : i32
    return %arg0, %arg1 : i32, i32
  }
}

</mosaic_0001>

<llo_original>
// kernel: tpu_custom_call.1
$region0: #{tpu_custom_call.1}
  #allocation0 [shape = 'u32[]', space=smem, size = 0x4, offset = 0x4, fixed_abs, tag = 'smem constant byte address 0x4 - core index']
  #allocation1 [shape = 'u32[144,128]{1,0:T(1,128)}', space=vmem, size = 0x12000, scoped, tag = 'internal scratch']
  #allocation2 [shape = 'f32[16,128]{1,0:T(8,128)}', space=vmem, size = 0x2000, scoped, tag = 'scratch operand']
  #allocation3 [shape = 'bf16[16,128]{1,0:T(16,128)(2,1)}', space=vmem, size = 0x1000, scoped, tag = 'scratch operand']
  #allocation4 [shape = 's32[1]{0}', space=sflag, size = 0x4, scoped, tag = 'scoped memory for tpu_custom_call.1']
  #allocation5 [shape = 'u8[512]{0}', space=smem, size = 0x200, scoped, tag = 'prefetched SMEM operand 0']
  %s0 = inlined_call_operand.hbm [shape: s32[16], index: 0, kind: input, shape index: {}]
  %s1 = inlined_call_operand.hbm [shape: f32[256,128], index: 1, kind: input, shape index: {}]
  %s2 = inlined_call_operand.hbm [shape: bf16[128,256], index: 2, kind: input, shape index: {}]
  %s3 = inlined_call_operand.vmem [shape: f32[1,256], index: 3, kind: input, shape index: {}]
  %s4 = inlined_call_operand.hbm [shape: bf16[16,256], index: 4, kind: output, shape index: {}]
  %s5 = sld [smem:[#allocation0]]
  $region41: #{tpu_custom_call.1} parent=0
    _
  %s7 = ssub.s32 1, %s5
  %s8 = scalar_select 0, %s7, %s5
  %10 = dma.hbm_to_smem %s0, 16, [#allocation5], [#allocation4]
  %11 = dma.done [#allocation4], 16
  %12 = sfence
  $region1: #{tpu_custom_call.1} parent=0
    #allocation6 [shape = 'u8[131072]{0}', space=vmem, size = 0x20000, scoped, tag = 'input window, operand 1, single buffered']
    #allocation7 [shape = 's32[1]{0}', space=sflag, size = 0x4, scoped, tag = 'scoped memory for tpu_custom_call.1']
    #allocation8 [shape = 's32[1]{0}', space=sflag, size = 0x4, scoped, tag = 'scoped memory for tpu_custom_call.1']
    #allocation9 [shape = 'u8[65536]{0}', space=vmem, size = 0x10000, scoped, tag = 'input window, operand 2, single buffered']
    #allocation10 [shape = 's32[1]{0}', space=sflag, size = 0x4, scoped, tag = 'scoped memory for tpu_custom_call.1']
    #allocation11 [shape = 'u8[8192]{0}', space=vmem, size = 0x2000, scoped, tag = 'output window, operand 0, single buffered']
    %13 = vsyncpa [#allocation7], 0
    %14 = vsyncpa [#allocation10], 0
    %15 = vsyncpa [#allocation8], 0
    // Predicated region
    $region2: #{tpu_custom_call.1} parent=1 // pred_check
      _
    $region3: #{tpu_custom_call.1} parent=1 // pred_check_branch
      %17 = sbr.rel (0) target = $region5
    $region4: #{tpu_custom_call.1} parent=1 // pred_region
      %s19 = ssub.s32 4096, 4096
      %20 = vsyncadd [#allocation7], %s19
      %s21 = sshll.u32 [#allocation6], 4
      %s22 = int_to_ptr.vmem [resolvable:$true] %s21
      %27 = dma.hbm_to_vmem [thread:$0]  %s1, 4096, %s22, [#allocation7], 128, 128, 8
    $region5: #{tpu_custom_call.1} parent=1 // pred_fallthru
      _
    // Predicated region
    $region6: #{tpu_custom_call.1} parent=1 // pred_check
      _
    $region7: #{tpu_custom_call.1} parent=1 // pred_check_branch
      %29 = sbr.rel (0) target = $region9
    $region8: #{tpu_custom_call.1} parent=1 // pred_region
      %s31 = ssub.s32 2048, 2048
      %32 = vsyncadd [#allocation10], %s31
      %s33 = sshll.u32 [#allocation9], 4
      %s34 = int_to_ptr.vmem [resolvable:$true] %s33
      %39 = dma.hbm_to_vmem [thread:$0]  %s2, 2048, %s34, [#allocation10], 128, 128, 8
    $region9: #{tpu_custom_call.1} parent=1 // pred_fallthru
      _
    // Predicated region
    $region10: #{tpu_custom_call.1} parent=1 // pred_check
      _
    $region11: #{tpu_custom_call.1} parent=1 // pred_check_branch
      %41 = sbr.rel (0) target = $region13
    $region12: #{tpu_custom_call.1} parent=1 // pred_region
      _
    $region13: #{tpu_custom_call.1} parent=1 // pred_fallthru
      _
    // Predicated region
    $region14: #{tpu_custom_call.1} parent=1 // pred_check
      _
    $region15: #{tpu_custom_call.1} parent=1 // pred_check_branch
      %43 = sbr.rel (0) target = $region17
    $region16: #{tpu_custom_call.1} parent=1 // pred_region
      %44 = dma.done [#allocation7], 4096
    $region17: #{tpu_custom_call.1} parent=1 // pred_fallthru
      _
    // Predicated region
    $region18: #{tpu_custom_call.1} parent=1 // pred_check
      _
    $region19: #{tpu_custom_call.1} parent=1 // pred_check_branch
      %46 = sbr.rel (0) target = $region21
    $region20: #{tpu_custom_call.1} parent=1 // pred_region
      %47 = dma.done [#allocation10], 2048
    $region21: #{tpu_custom_call.1} parent=1 // pred_fallthru
      _
    %p49 = scmp.eq.s32.totalorder 0, 0
    // Predicated region
    $region22: #{tpu_custom_call.1} parent=1 // pred_check
      %p50 = pneg %p49
    $region23: #{tpu_custom_call.1} parent=1 // pred_check_branch
      %52 = sbr.rel (%p50) target = $region25
    $region24: #{tpu_custom_call.1} parent=1 // pred_region
      %s53 = smul.u32 0, 16
      loop: start=0, step=1, limit=16
      $region26: #{tpu_custom_call.1} parent=24 // loop_pre_header
        _
      $region27: #{tpu_custom_call.1} parent=24 // loop_header
        %s55 = sphi 0, %s59
        %p56 = scmp.ge.s32.totalorder %s55, 16
      $region28: #{tpu_custom_call.1} parent=24 // loop_header_branch
        %58 = sbr.rel (%p56) target = $region32
      $region29: #{tpu_custom_call.1} parent=24 // loop_body
        %s60 = sadd.s32 %s53, %s55
        %s61 = sld [smem:[#allocation5 + %s60]]
        %s62 = scalar_lea.vmem [#allocation6], %s61
        %v63 = vld [vmem:[%s62] sm:$0x1]
        %s64 = scalar_lea.vmem [#allocation2], %s55
        %65 = vst [vmem:[%s64] sm:$0x1] %v63
      $region30: #{tpu_custom_call.1} parent=24 // loop_footer
        %s59 = sadd.s32 1, %s55
      $region31: #{tpu_custom_call.1} parent=24 // loop_footer_branch
        %54 = sbr.rel target = $region27
      $region32: #{tpu_custom_call.1} parent=24 // loop_exit
        _
      %v66 = vld [vmem:[#allocation2] sm:$0xff]
      %v67 = vld [vmem:[#allocation2 + $0x8] sm:$0xff]
      %v68 = vpack.c.bf16 %v67, %v66
      %69 = vst [vmem:[#allocation3] sm:$0xff] %v68
    $region25: #{tpu_custom_call.1} parent=1 // pred_fallthru
      _
    %v70 = vld [vmem:[#allocation3] sm:$0xff]
    %v71 = vld [vmem:[#allocation9] sm:$0xff]
    %v72 = vld [vmem:[#allocation9 + $0x8] sm:$0xff]
    %v73 = vld [vmem:[#allocation9 + $0x10] sm:$0xff]
    %v74 = vld [vmem:[#allocation9 + $0x18] sm:$0xff]
    %v75 = vld [vmem:[#allocation9 + $0x20] sm:$0xff]
    %v76 = vld [vmem:[#allocation9 + $0x28] sm:$0xff]
    %v77 = vld [vmem:[#allocation9 + $0x30] sm:$0xff]
    %v78 = vld [vmem:[#allocation9 + $0x38] sm:$0xff]
    %v79 = vld [vmem:[#allocation9 + $0x40] sm:$0xff]
    %v80 = vld [vmem:[#allocation9 + $0x48] sm:$0xff]
    %v81 = vld [vmem:[#allocation9 + $0x50] sm:$0xff]
    %v82 = vld [vmem:[#allocation9 + $0x58] sm:$0xff]
    %v83 = vld [vmem:[#allocation9 + $0x60] sm:$0xff]
    %v84 = vld [vmem:[#allocation9 + $0x68] sm:$0xff]
    %v85 = vld [vmem:[#allocation9 + $0x70] sm:$0xff]
    %v86 = vld [vmem:[#allocation9 + $0x78] sm:$0xff]
    %v87 = vld [vmem:[%s3] sm:$0x3]
    %v89 = vlaneseq
    %v90 = vshrl.u32 %v89, 7
    %v91 = vsub.s32 0, %v90
    %v92 = vrot.slane %v87, %v91
    %v93 = vlaneseq
    %v94 = vshrl.u32 %v93, 7
    %v95 = vsub.s32 1, %v94
    %v96 = vrot.slane %v87, %v95
    %v115 = vunpack.c.l.b16 %v71
    %v116 = vunpack.c.h.b16 %v71
    %v117 = vunpack.c.l.b16 %v72
    %v118 = vunpack.c.h.b16 %v72
    %v119 = vunpack.c.l.b16 %v73
    %v120 = vunpack.c.h.b16 %v73
    %v121 = vunpack.c.l.b16 %v74
    %v122 = vunpack.c.h.b16 %v74
    %v123 = vunpack.c.l.b16 %v75
    %v124 = vunpack.c.h.b16 %v75
    %v125 = vunpack.c.l.b16 %v76
    %v126 = vunpack.c.h.b16 %v76
    %v127 = vunpack.c.l.b16 %v77
    %v128 = vunpack.c.h.b16 %v77
    %v129 = vunpack.c.l.b16 %v78
    %v130 = vunpack.c.h.b16 %v78
    %v131 = vunpack.c.l.b16 %v79
    %v132 = vunpack.c.h.b16 %v79
    %v133 = vunpack.c.l.b16 %v80
    %v134 = vunpack.c.h.b16 %v80
    %v135 = vunpack.c.l.b16 %v81
    %v136 = vunpack.c.h.b16 %v81
    %v137 = vunpack.c.l.b16 %v82
    %v138 = vunpack.c.h.b16 %v82
    %v139 = vunpack.c.l.b16 %v83
    %v140 = vunpack.c.h.b16 %v83
    %v141 = vunpack.c.l.b16 %v84
    %v142 = vunpack.c.h.b16 %v84
    %v143 = vunpack.c.l.b16 %v85
    %v144 = vunpack.c.h.b16 %v85
    %v145 = vunpack.c.l.b16 %v86
    %v146 = vunpack.c.h.b16 %v86
    %v147 = vpack.c.b16 %v117, %v115
    %v148 = vpack.c.b16 %v118, %v116
    %v149 = vpack.c.b16 %v121, %v119
    %v150 = vpack.c.b16 %v122, %v120
    %v151 = vpack.c.b16 %v125, %v123
    %v152 = vpack.c.b16 %v126, %v124
    %v153 = vpack.c.b16 %v129, %v127
    %v154 = vpack.c.b16 %v130, %v128
    %v155 = vpack.c.b16 %v133, %v131
    %v156 = vpack.c.b16 %v134, %v132
    %v157 = vpack.c.b16 %v137, %v135
    %v158 = vpack.c.b16 %v138, %v136
    %v159 = vpack.c.b16 %v141, %v139
    %v160 = vpack.c.b16 %v142, %v140
    %v161 = vpack.c.b16 %v145, %v143
    %v162 = vpack.c.b16 %v146, %v144
    %179 = vmatprep.subr.bf16.mxu0 %v148
    %180 = vmatpush1.bf16.msra.mxu0 %v147
    %181 = vmatprep.subr.bf16.mxu0 %v150
    %182 = vmatpush1.bf16.msra.mxu0 %v149
    %183 = vmatprep.subr.bf16.mxu0 %v152
    %184 = vmatpush1.bf16.msra.mxu0 %v151
    %185 = vmatprep.subr.bf16.mxu0 %v154
    %186 = vmatpush1.bf16.msra.mxu0 %v153
    %187 = vmatprep.subr.bf16.mxu0 %v156
    %188 = vmatpush1.bf16.msra.mxu0 %v155
    %189 = vmatprep.subr.bf16.mxu0 %v158
    %190 = vmatpush1.bf16.msra.mxu0 %v157
    %191 = vmatprep.subr.bf16.mxu0 %v160
    %192 = vmatpush1.bf16.msra.mxu0 %v159
    %193 = vmatprep.subr.bf16.mxu0 %v162
    %194 = vmatpush1.bf16.msra.mxu0 %v161
    %195 = vmatprep.subr.bf16.mxu0 0
    %196 = vmatpush1.bf16.msra.mxu0 0
    %197 = vmatprep.subr.bf16.mxu0 0
    %198 = vmatpush1.bf16.msra.mxu0 0
    %199 = vmatprep.subr.bf16.mxu0 0
    %200 = vmatpush1.bf16.msra.mxu0 0
    %201 = vmatprep.subr.bf16.mxu0 0
    %202 = vmatpush1.bf16.msra.mxu0 0
    %203 = vmatprep.subr.bf16.mxu0 0
    %204 = vmatpush1.bf16.msra.mxu0 0
    %205 = vmatprep.subr.bf16.mxu0 0
    %206 = vmatpush1.bf16.msra.mxu0 0
    %207 = vmatprep.subr.bf16.mxu0 0
    %208 = vmatpush1.bf16.msra.mxu0 0
    %209 = vmatprep.subr.bf16.mxu0 0
    %210 = vmatpush1.bf16.msra.mxu0 0
    %211 = vmatprep.mubr.bf16.mxu0 0
    %212 = vmatmul.mubr.bf16.gmra.mrb[0].mxu0 %v70
    %v213 = vpop.f32.mrb[0].mxu0
    %v214 = vadd.f32 %v92, %v213
    %v215 = vpop.f32.mrb[0].mxu0
    %v216 = vadd.f32 %v96, %v215
    %v217 = vpop.f32.mrb[0].mxu0
    %v218 = vadd.f32 %v92, %v217
    %v219 = vpop.f32.mrb[0].mxu0
    %v220 = vadd.f32 %v96, %v219
    %221 = vdwg.mxu0
    %v222 = vpack.c.bf16 %v218, %v214
    %v223 = vpack.c.bf16 %v220, %v216
    %v226 = vunpack.c.l.b16 %v222
    %v227 = vunpack.c.l.b16 %v223
    %v228 = vunpack.c.h.b16 %v222
    %v229 = vunpack.c.h.b16 %v223
    %v230 = vpack.c.b16 %v227, %v226
    %v231 = vpack.c.b16 %v229, %v228
    %234 = vst [vmem:[#allocation11] sm:$0xff] %v230
    %235 = vst [vmem:[#allocation11 + $0x8] sm:$0xff] %v231
    // Predicated region
    $region33: #{tpu_custom_call.1} parent=1 // pred_check
      _
    $region34: #{tpu_custom_call.1} parent=1 // pred_check_branch
      %237 = sbr.rel (0) target = $region36
    $region35: #{tpu_custom_call.1} parent=1 // pred_region
      %s239 = ssub.s32 256, 256
      %240 = vsyncadd [#allocation8], %s239
      %s241 = sshll.u32 [#allocation11], 4
      %s242 = int_to_ptr.vmem [resolvable:$true] %s241
      %247 = dma.vmem_to_hbm [thread:$0]  %s242, 256, %s4, [#allocation8], 128, 128, 8
    $region36: #{tpu_custom_call.1} parent=1 // pred_fallthru
      _
    // Predicated region
    $region37: #{tpu_custom_call.1} parent=1 // pred_check
      _
    $region38: #{tpu_custom_call.1} parent=1 // pred_check_branch
      %249 = sbr.rel (0) target = $region40
    $region39: #{tpu_custom_call.1} parent=1 // pred_region
      %250 = dma.done [#allocation8], 256
    $region40: #{tpu_custom_call.1} parent=1 // pred_fallthru
      _
    %251 = vsyncpa [#allocation7], 1
    %252 = vsyncpa [#allocation10], 1
    %253 = vsyncpa [#allocation8], 1

</llo_original>
